<compile_context>
chip_gen: v7x
topology: tpu7x:2x2x1
jax: 0.10.0
libtpu: 0.0.40
codegen_flags: <defaults>
</compile_context>

<pallas_src>
import functools

import jax
import jax.numpy as jnp
from jax import lax
from jax.experimental import pallas as pl
from jax.experimental.pallas import tpu as pltpu


def _round_up(x, m):
    return (x + m - 1) // m * m


def _cdiv(a, b):
    return -(-a // b)


def _proj_kernel(x_ref, w_ref, b_ref, o_ref, *, k_dim, use_mxu):
    """Channel projection (1x1 conv) + bias for one (batch, lane-tile) block.

    x_ref: (K, tile_p)    downsampled/pooled features; lanes are ho*Wo + wo
    w_ref: (Cout, K)
    b_ref: (Cout, 1)
    o_ref: (Cout, tile_p)
    """
    bias = b_ref[...].astype(jnp.float32)                        # (Cout, 1)
    if use_mxu:
        # Realistic channel counts: single MXU matmul, f32 accumulate.
        acc = jnp.dot(w_ref[...], x_ref[...],
                      preferred_element_type=jnp.float32)
        o_ref[...] = (acc + bias).astype(o_ref.dtype)
    else:
        # Tiny K/Cout (e.g. Cin=4, Cout=8): broadcast FMAs on the VPU. Read one row
        # from the ref per step so only a couple of input vregs are live at a time.
        w = w_ref[...].astype(jnp.float32)                       # (Cout, K) — tiny
        acc = jnp.broadcast_to(bias, o_ref.shape)                # hoisted broadcast
        for k in range(k_dim):                                   # K < 32 here: cheap unroll
            xk = x_ref[k:k + 1, :].astype(jnp.float32)           # (1, tile_p) row load
            acc = acc + w[:, k:k + 1] * xk                       # (Cout,1)*(1,P) FMA
        o_ref[...] = acc.astype(o_ref.dtype)


def down_forward(x, w, b, *, scale_factor=2, mode="conv1x1"):
    """Pallas-backed Down.forward.

    x: (N, Cin, H, W) NCHW like PyTorch; w: OIHW conv weight; b: (Cout,).
    """
    assert mode in ("max", "avg", "conv", "conv1x1")
    N, Cin, H, W = x.shape
    s = scale_factor
    # TODO(synk): PyTorch floor behavior for H/W not divisible by scale_factor not handled.
    assert H % s == 0 and W % s == 0
    Ho, Wo = H // s, W // s
    Cout = w.shape[0]
    P = Ho * Wo

    # ---- downsample / pool (data-reducing, no N<->C transpose anywhere) -------------
    if mode == "conv1x1":
        # Stride-s 1x1 conv only reads the (ky=0,kx=0) tap: subsample FIRST so the
        # kernel DMAs K = Cin rows, not Cin*s*s.
        feat = x[:, :, ::s, ::s].reshape(N, Cin, P)
        w2 = w.reshape(Cout, Cin)
    elif mode == "max":
        pooled = lax.reduce_window(x, -jnp.inf, lax.max,
                                   (1, 1, s, s), (1, 1, s, s), "VALID")
        feat = pooled.reshape(N, Cin, P)
        w2 = w.reshape(Cout, Cin)
    elif mode == "avg":
        # Sum-pool; fold the 1/(s*s) into the tiny weight instead of rescaling feat.
        pooled = lax.reduce_window(x, 0.0, lax.add,
                                   (1, 1, s, s), (1, 1, s, s), "VALID")
        feat = pooled.reshape(N, Cin, P)
        w2 = (w.reshape(Cout, Cin) * (1.0 / (s * s))).astype(w.dtype)
    else:  # 'conv': every input element is a conv tap, so one patchify pass remains.
        # TODO(synk): 'conv' mode keeps a wrapper-side (ci,ky,kx) relayout pass.
        feat = x.reshape(N, Cin, Ho, s, Wo, s)
        feat = jnp.transpose(feat, (0, 1, 3, 5, 2, 4)).reshape(N, Cin * s * s, P)
        w2 = w.reshape(Cout, Cin * s * s)
    K = feat.shape[1]
    b2 = b.reshape(Cout, 1)

    # ---- lane-dense tiling over Ho*Wo ------------------------------------------------
    p128 = _round_up(P, 128)
    n_tiles = _cdiv(p128, 2048)                 # cap per-block lanes (VMEM-safe on v7x)
    if N * n_tiles < 2 and p128 >= 256:
        n_tiles = 2                             # >=2 grid steps: pipelining + 2nd TC (v7x)
    tile_p = _round_up(_cdiv(p128, n_tiles), 128)
    n_tiles = _cdiv(p128, tile_p)               # bounded padding (<128 lanes + round-up)
    P_pad = n_tiles * tile_p
    if P_pad != P:
        feat = jnp.pad(feat, ((0, 0), (0, 0), (0, P_pad - P)))

    use_mxu = (Cout >= 32) or (K >= 32)         # v5e/v6e VPU has no f32 FMA
    kernel = functools.partial(_proj_kernel, k_dim=K, use_mxu=use_mxu)

    out = pl.pallas_call(
        kernel,
        out_shape=jax.ShapeDtypeStruct((N, Cout, P_pad), x.dtype),
        grid=(N, n_tiles),
        in_specs=[
            pl.BlockSpec((None, K, tile_p), lambda n, j: (n, 0, j)),
            pl.BlockSpec((Cout, K), lambda n, j: (0, 0)),
            pl.BlockSpec((Cout, 1), lambda n, j: (0, 0)),
        ],
        out_specs=pl.BlockSpec((None, Cout, tile_p), lambda n, j: (n, 0, j)),
        compiler_params=pltpu.CompilerParams(
            # every (batch, lane-tile) block is independent
            dimension_semantics=("parallel", "parallel")),
    )(feat, w2, b2)

    # Contiguous reshape only — no output transpose.
    return out[:, :, :P].reshape(N, Cout, Ho, Wo)


def down_reference(x, w, b, *, scale_factor=2, mode="conv1x1"):
    """Pure-JAX reference (lax conv / reduce_window) for correctness checking."""
    s = scale_factor
    dn = ("NCHW", "OIHW", "NCHW")
    if mode == "max":
        feat = lax.reduce_window(x, -jnp.inf, lax.max, (1, 1, s, s), (1, 1, s, s), "VALID")
        y = lax.conv_general_dilated(feat, w, (1, 1), "VALID", dimension_numbers=dn)
    elif mode == "avg":
        feat = lax.reduce_window(x, 0.0, lax.add, (1, 1, s, s), (1, 1, s, s), "VALID") / (s * s)
        y = lax.conv_general_dilated(feat, w, (1, 1), "VALID", dimension_numbers=dn)
    else:  # 'conv1x1' (k=1, stride=s) or 'conv' (k=s, stride=s)
        y = lax.conv_general_dilated(x, w, (s, s), "VALID", dimension_numbers=dn)
    return y + b.reshape(1, -1, 1, 1)


if __name__ == "__main__":
    # Shapes consistent with Down(in_channels=4, out_channels=8), NCHW input like PyTorch.
    N, Cin, H, W = 2, 4, 16, 16
    Cout, s = 8, 2

    key = jax.random.PRNGKey(0)
    kx, kw1, kb1, kw2, kb2, kx3, kw3, kb3 = jax.random.split(key, 8)
    x = jax.random.normal(kx, (N, Cin, H, W), jnp.float32)
    w1x1 = 0.1 * jax.random.normal(kw1, (Cout, Cin, 1, 1), jnp.float32)
    b1x1 = 0.1 * jax.random.normal(kb1, (Cout,), jnp.float32)
    wsxs = 0.1 * jax.random.normal(kw2, (Cout, Cin, s, s), jnp.float32)
    bsxs = 0.1 * jax.random.normal(kb2, (Cout,), jnp.float32)

    # Default construction: mode='conv1x1' (small channels -> VPU broadcast-FMA path).
    out = jax.block_until_ready(down_forward(x, w1x1, b1x1, scale_factor=s, mode="conv1x1"))
    assert out.shape == (N, Cout, H // s, W // s) and out.dtype == jnp.float32
    ref = down_reference(x, w1x1, b1x1, scale_factor=s, mode="conv1x1")
    err = float(jnp.max(jnp.abs(out - ref)))
    assert err < 1e-4, f"conv1x1 mismatch vs reference: max abs err {err}"

    # Exercise the other constructor modes through the same kernel.
    for mode, (wm, bm) in (("max", (w1x1, b1x1)),
                           ("avg", (w1x1, b1x1)),
                           ("conv", (wsxs, bsxs))):
        o = jax.block_until_ready(down_forward(x, wm, bm, scale_factor=s, mode=mode))
        r = down_reference(x, wm, bm, scale_factor=s, mode=mode)
        e = float(jnp.max(jnp.abs(o - r)))
        assert e < 1e-4, f"{mode} mismatch vs reference: max abs err {e}"

    # Realistic channel counts exercise the MXU path (Cout >= 32 or K >= 32).
    Cin2, Cout2 = 64, 64
    x3 = jax.random.normal(kx3, (1, Cin2, 8, 8), jnp.float32)
    w3 = 0.1 * jax.random.normal(kw3, (Cout2, Cin2, 1, 1), jnp.float32)
    b3 = 0.1 * jax.random.normal(kb3, (Cout2,), jnp.float32)
    o3 = jax.block_until_ready(down_forward(x3, w3, b3, scale_factor=s, mode="conv1x1"))
    r3 = down_reference(x3, w3, b3, scale_factor=s, mode="conv1x1")
    e3 = float(jnp.max(jnp.abs(o3 - r3)))
    assert e3 < 5e-2, f"MXU conv1x1 mismatch vs reference: max abs err {e3}"

    print("KERNEL_OK")
</pallas_src>

<mosaic_0001>
module attributes {stable_mosaic.version = 11 : i64} {
  func.func @_proj_kernel(%arg0: i32, %arg1: i32, %arg2: memref<1x4x128xf32, #tpu.memory_space<vmem>>, %arg3: memref<8x4xf32, #tpu.memory_space<vmem>>, %arg4: memref<8x1xf32, #tpu.memory_space<vmem>>, %arg5: memref<1x8x128xf32, #tpu.memory_space<vmem>>) attributes {dimension_semantics = [#tpu.dimension_semantics<parallel>, #tpu.dimension_semantics<parallel>], iteration_bounds = array<i64: 2, 1>, scalar_prefetch = 0 : i64, scratch_operands = 0 : i64, tpu.core_type = #tpu.core_type<tc>, window_params = [{transform_indices = @transform_0, window_bounds = array<i64: 1, 4, 128>}, {pipeline_mode = #tpu.pipeline_mode<synchronous>, transform_indices = @transform_1, window_bounds = array<i64: 8, 4>}, {pipeline_mode = #tpu.pipeline_mode<synchronous>, transform_indices = @transform_2, window_bounds = array<i64: 8, 1>}, {transform_indices = @transform_3, window_bounds = array<i64: 1, 8, 128>}]} {
    %c0 = arith.constant 0 : index
    %c0_0 = arith.constant 0 : index
    %0 = vector.load %arg4[%c0, %c0_0] : memref<8x1xf32, #tpu.memory_space<vmem>>, vector<8x1xf32>
    %c0_1 = arith.constant 0 : index
    %c0_2 = arith.constant 0 : index
    %1 = vector.load %arg3[%c0_1, %c0_2] : memref<8x4xf32, #tpu.memory_space<vmem>>, vector<8x4xf32>
    %2 = vector.shape_cast %0 : vector<8x1xf32> to vector<8x1xf32>
    %3 = vector.broadcast %2 : vector<8x1xf32> to vector<8x128xf32>
    %c0_3 = arith.constant 0 : index
    %c0_4 = arith.constant 0 : index
    %c0_5 = arith.constant 0 : index
    %4 = vector.load %arg2[%c0_3, %c0_4, %c0_5] : memref<1x4x128xf32, #tpu.memory_space<vmem>>, vector<1x1x128xf32>
    %5 = vector.shape_cast %4 : vector<1x1x128xf32> to vector<1x128xf32>
    %6 = vector.extract_strided_slice %1 {offsets = [0, 0], sizes = [8, 1], strides = [1, 1]} : vector<8x4xf32> to vector<8x1xf32>
    %7 = vector.broadcast %6 : vector<8x1xf32> to vector<8x128xf32>
    %8 = vector.broadcast %5 : vector<1x128xf32> to vector<8x128xf32>
    %9 = arith.mulf %7, %8 : vector<8x128xf32>
    %10 = arith.addf %3, %9 : vector<8x128xf32>
    %c0_6 = arith.constant 0 : index
    %c1 = arith.constant 1 : index
    %c0_7 = arith.constant 0 : index
    %11 = vector.load %arg2[%c0_6, %c1, %c0_7] : memref<1x4x128xf32, #tpu.memory_space<vmem>>, vector<1x1x128xf32>
    %12 = vector.shape_cast %11 : vector<1x1x128xf32> to vector<1x128xf32>
    %13 = vector.extract_strided_slice %1 {offsets = [0, 1], sizes = [8, 1], strides = [1, 1]} : vector<8x4xf32> to vector<8x1xf32>
    %14 = vector.broadcast %13 : vector<8x1xf32> to vector<8x128xf32>
    %15 = vector.broadcast %12 : vector<1x128xf32> to vector<8x128xf32>
    %16 = arith.mulf %14, %15 : vector<8x128xf32>
    %17 = arith.addf %10, %16 : vector<8x128xf32>
    %c0_8 = arith.constant 0 : index
    %c2 = arith.constant 2 : index
    %c0_9 = arith.constant 0 : index
    %18 = vector.load %arg2[%c0_8, %c2, %c0_9] : memref<1x4x128xf32, #tpu.memory_space<vmem>>, vector<1x1x128xf32>
    %19 = vector.shape_cast %18 : vector<1x1x128xf32> to vector<1x128xf32>
    %20 = vector.extract_strided_slice %1 {offsets = [0, 2], sizes = [8, 1], strides = [1, 1]} : vector<8x4xf32> to vector<8x1xf32>
    %21 = vector.broadcast %20 : vector<8x1xf32> to vector<8x128xf32>
    %22 = vector.broadcast %19 : vector<1x128xf32> to vector<8x128xf32>
    %23 = arith.mulf %21, %22 : vector<8x128xf32>
    %24 = arith.addf %17, %23 : vector<8x128xf32>
    %c0_10 = arith.constant 0 : index
    %c3 = arith.constant 3 : index
    %c0_11 = arith.constant 0 : index
    %25 = vector.load %arg2[%c0_10, %c3, %c0_11] : memref<1x4x128xf32, #tpu.memory_space<vmem>>, vector<1x1x128xf32>
    %26 = vector.shape_cast %25 : vector<1x1x128xf32> to vector<1x128xf32>
    %27 = vector.extract_strided_slice %1 {offsets = [0, 3], sizes = [8, 1], strides = [1, 1]} : vector<8x4xf32> to vector<8x1xf32>
    %28 = vector.broadcast %27 : vector<8x1xf32> to vector<8x128xf32>
    %29 = vector.broadcast %26 : vector<1x128xf32> to vector<8x128xf32>
    %30 = arith.mulf %28, %29 : vector<8x128xf32>
    %31 = arith.addf %24, %30 : vector<8x128xf32>
    %c0_12 = arith.constant 0 : index
    %c0_13 = arith.constant 0 : index
    %c0_14 = arith.constant 0 : index
    %32 = vector.load %arg5[%c0_12, %c0_13, %c0_14] : memref<1x8x128xf32, #tpu.memory_space<vmem>>, vector<1x8x128xf32>
    %33 = vector.shape_cast %32 : vector<1x8x128xf32> to vector<8x128xf32>
    %34 = vector.shape_cast %31 : vector<8x128xf32> to vector<1x8x128xf32>
    tpu.vector_store %arg5[%c0_12, %c0_13, %c0_14], %34 {strides = array<i32>} : memref<1x8x128xf32, #tpu.memory_space<vmem>>, vector<1x8x128xf32>,
    return
  }
  func.func @transform_0(%arg0: i32, %arg1: i32) -> (i32, i32, i32) {
    %c0_i32 = arith.constant 0 : i32
    %c0_i32_0 = arith.constant 0 : i32
    return %arg0, %c0_i32, %arg1 : i32, i32, i32
  }
  func.func @transform_1(%arg0: i32, %arg1: i32) -> (i32, i32) {
    %c0_i32 = arith.constant 0 : i32
    %c0_i32_0 = arith.constant 0 : i32
    %c0_i32_1 = arith.constant 0 : i32
    return %c0_i32, %c0_i32_0 : i32, i32
  }
  func.func @transform_2(%arg0: i32, %arg1: i32) -> (i32, i32) {
    %c0_i32 = arith.constant 0 : i32
    %c0_i32_0 = arith.constant 0 : i32
    %c0_i32_1 = arith.constant 0 : i32
    return %c0_i32, %c0_i32_0 : i32, i32
  }
  func.func @transform_3(%arg0: i32, %arg1: i32) -> (i32, i32, i32) {
    %c0_i32 = arith.constant 0 : i32
    %c0_i32_0 = arith.constant 0 : i32
    return %arg0, %c0_i32, %arg1 : i32, i32, i32
  }
}

</mosaic_0001>

<llo_original>
// kernel: tpu_custom_call.1
$region0: #{tpu_custom_call.1}
  #allocation0 [shape = 'u32[]', space=smem, size = 0x4, offset = 0x4, fixed_abs, tag = 'smem constant byte address 0x4 - core index']
  #allocation1 [shape = 'u32[144,128]{1,0:T(1,128)}', space=vmem, size = 0x12000, scoped, tag = 'internal scratch']
  %s0 = inlined_call_operand.vmem [shape: f32[2,4,128], index: 0, kind: input, shape index: {}]
  %s1 = inlined_call_operand.vmem [shape: f32[8,4], index: 1, kind: input, shape index: {}]
  %s2 = inlined_call_operand.vmem [shape: f32[8,1], index: 2, kind: input, shape index: {}]
  %s3 = inlined_call_operand.hbm [shape: f32[2,8,128], index: 3, kind: output, shape index: {}]
  %s4 = sld [smem:[#allocation0]]
  $region45: #{tpu_custom_call.1} parent=0
    _
  %s6 = ssub.s32 1, %s4
  %s7 = scalar_select 0, %s6, %s4
  $region1: #{tpu_custom_call.1} parent=0
    #allocation2 [shape = 'u8[8192]{0}', space=vmem, size = 0x2000, scoped, tag = 'output window, operand 0']
    #allocation3 [shape = 's32[2]{0}', space=sflag, size = 0x8, scoped, tag = 'scoped memory for tpu_custom_call.1']
    %8 = vsyncpa [#allocation3], 0
    %s9 = scalar_lea.sflag [#allocation3], 1
    %10 = vsyncpa %s9, 0
    loop: start=0, step=1, limit=4
    $region2: #{tpu_custom_call.1} parent=1 // loop_pre_header
      _
    $region3: #{tpu_custom_call.1} parent=1 // loop_header
      %s12 = sphi 0, %s16
      %p13 = scmp.ge.s32.totalorder %s12, 4
      %s19 = sphi 0, %s31
      %s20 = sphi 0, %s27
      %s21 = sphi 0, %s19
      %s22 = sphi 0, %s20
      %s23 = sphi 0, %s21
      %s24 = sphi 0, %s22
      %s36 = sphi 0, %s38
      %s39 = sphi 0, %s36
      %s40 = sphi 0, %s39
      %s56 = sphi 0, %s40
      %s60 = sphi 0, %s60
      %s62 = sphi 0, %s60
      %s63 = sphi 0, %s62
      %s77 = sphi 0, %s63
      %s81 = sphi 0, %s81
      %s83 = sphi 0, %s81
      %s84 = sphi 0, %s83
      %s98 = sphi 0, %s84
      %s106 = sphi 0, %s108
      %s109 = sphi 0, %s106
      %s110 = sphi 0, %s109
      %s126 = sphi 0, %s110
    $region4: #{tpu_custom_call.1} parent=1 // loop_header_branch
      %15 = sbr.rel (%p13) target = $region8
    $region5: #{tpu_custom_call.1} parent=1 // loop_body
      %s17 = ssub.s32 %s12, 1
      %s18 = ssub.s32 %s12, 2
      %s25 = sadd.s32 1, %s20
      %p26 = scmp.ge.s32.totalorder %s25, 1
      %s27 = scalar_select %p26, 0, %s25
      %s28 = sadd.s32 1, %s19
      %s29 = scalar_select %p26, %s28, %s19
      %p30 = scmp.ge.s32.totalorder %s29, 2
      %s31 = scalar_select %p30, 0, %s29
      %s32 = ssub.s32 %s19, %s31
      %s33 = ssub.s32 %s20, %s27
      %s34 = sor.u32 %s32, %s33
      %p35 = scmp.eq.s32.totalorder %s34, 0
      %s37 = sadd.s32 %s36, 1
      %s38 = scalar_select %p35, %s36, %s37
      %p41 = pneg %p35
      %p42 = scmp.eq.s32.totalorder %s12, 1
      %p43 = por %p41, %p42
      %p44 = scmp.ne.s32.totalorder %s36, %s39
      %p45 = scmp.eq.s32.totalorder %s12, 0
      %p46 = por %p44, %p45
      %p47 = scmp.ne.s32.totalorder %s36, %s39
      %p48 = scmp.eq.s32.totalorder %s17, 1
      %p49 = por %p47, %p48
      %p50 = scmp.ne.s32.totalorder %s39, %s40
      %p51 = scmp.eq.s32.totalorder %s17, 0
      %p52 = por %p50, %p51
      %p53 = scmp.ne.s32.totalorder %s39, %s40
      %p54 = scmp.eq.s32.totalorder %s18, 1
      %p55 = por %p53, %p54
      %p57 = scmp.ne.s32.totalorder %s40, %s56
      %p58 = scmp.eq.s32.totalorder %s18, 0
      %p59 = por %p57, %p58
      %s61 = sadd.s32 %s60, 1
      %p64 = scmp.eq.s32.totalorder %s12, 1
      %p65 = scmp.ne.s32.totalorder %s60, %s62
      %p66 = scmp.eq.s32.totalorder %s12, 0
      %p67 = por %p65, %p66
      %p68 = scmp.ne.s32.totalorder %s60, %s62
      %p69 = scmp.eq.s32.totalorder %s17, 1
      %p70 = por %p68, %p69
      %p71 = scmp.ne.s32.totalorder %s62, %s63
      %p72 = scmp.eq.s32.totalorder %s17, 0
      %p73 = por %p71, %p72
      %p74 = scmp.ne.s32.totalorder %s62, %s63
      %p75 = scmp.eq.s32.totalorder %s18, 1
      %p76 = por %p74, %p75
      %p78 = scmp.ne.s32.totalorder %s63, %s77
      %p79 = scmp.eq.s32.totalorder %s18, 0
      %p80 = por %p78, %p79
      %s82 = sadd.s32 %s81, 1
      %p85 = scmp.eq.s32.totalorder %s12, 1
      %p86 = scmp.ne.s32.totalorder %s81, %s83
      %p87 = scmp.eq.s32.totalorder %s12, 0
      %p88 = por %p86, %p87
      %p89 = scmp.ne.s32.totalorder %s81, %s83
      %p90 = scmp.eq.s32.totalorder %s17, 1
      %p91 = por %p89, %p90
      %p92 = scmp.ne.s32.totalorder %s83, %s84
      %p93 = scmp.eq.s32.totalorder %s17, 0
      %p94 = por %p92, %p93
      %p95 = scmp.ne.s32.totalorder %s83, %s84
      %p96 = scmp.eq.s32.totalorder %s18, 1
      %p97 = por %p95, %p96
      %p99 = scmp.ne.s32.totalorder %s84, %s98
      %p100 = scmp.eq.s32.totalorder %s18, 0
      %p101 = por %p99, %p100
      %s102 = ssub.s32 %s19, %s31
      %s103 = ssub.s32 %s20, %s27
      %s104 = sor.u32 %s102, %s103
      %p105 = scmp.eq.s32.totalorder %s104, 0
      %s107 = sadd.s32 %s106, 1
      %s108 = scalar_select %p105, %s106, %s107
      %p111 = pneg %p105
      %p112 = scmp.eq.s32.totalorder %s12, 1
      %p113 = por %p111, %p112
      %p114 = scmp.ne.s32.totalorder %s106, %s109
      %p115 = scmp.eq.s32.totalorder %s12, 0
      %p116 = por %p114, %p115
      %p117 = scmp.ne.s32.totalorder %s106, %s109
      %p118 = scmp.eq.s32.totalorder %s17, 1
      %p119 = por %p117, %p118
      %p120 = scmp.ne.s32.totalorder %s109, %s110
      %p121 = scmp.eq.s32.totalorder %s17, 0
      %p122 = por %p120, %p121
      %p123 = scmp.ne.s32.totalorder %s109, %s110
      %p124 = scmp.eq.s32.totalorder %s18, 1
      %p125 = por %p123, %p124
      %p127 = scmp.ne.s32.totalorder %s110, %s126
      %p128 = scmp.eq.s32.totalorder %s18, 0
      %p129 = por %p127, %p128
      %p130 = scmp.le.s32.totalorder 1, %s12
      %p131 = scmp.lt.s32.totalorder %s12, 3
      %p132 = pnand %p130, %p131
      %p133 = pneg %p132
      // Predicated region
      $region9: #{tpu_custom_call.1} parent=5 // pred_check
        _
      $region10: #{tpu_custom_call.1} parent=5 // pred_check_branch
        %135 = sbr.rel (%p132) target = $region12
      $region11: #{tpu_custom_call.1} parent=5 // pred_region
        %s136 = ssub.s32 %s12, 1
        // Predicated region
        $region13: #{tpu_custom_call.1} parent=11 // pred_check
          %p137 = pneg %p73
        $region14: #{tpu_custom_call.1} parent=11 // pred_check_branch
          %139 = sbr.rel (%p137) target = $region16
        $region15: #{tpu_custom_call.1} parent=11 // pred_region
          _
        $region16: #{tpu_custom_call.1} parent=11 // pred_fallthru
          _
        // Predicated region
        $region17: #{tpu_custom_call.1} parent=11 // pred_check
          %p140 = pneg %p94
        $region18: #{tpu_custom_call.1} parent=11 // pred_check_branch
          %142 = sbr.rel (%p140) target = $region20
        $region19: #{tpu_custom_call.1} parent=11 // pred_region
          _
        $region20: #{tpu_custom_call.1} parent=11 // pred_fallthru
          _
      $region12: #{tpu_custom_call.1} parent=5 // pred_fallthru
        _
      %p143 = scmp.lt.s32.totalorder %s12, 2
      // Predicated region
      $region21: #{tpu_custom_call.1} parent=5 // pred_check
        %p144 = pneg %p143
      $region22: #{tpu_custom_call.1} parent=5 // pred_check_branch
        %146 = sbr.rel (%p144) target = $region24
      $region23: #{tpu_custom_call.1} parent=5 // pred_region
        // Predicated region
        $region25: #{tpu_custom_call.1} parent=23 // pred_check
          %p147 = pneg %p46
        $region26: #{tpu_custom_call.1} parent=23 // pred_check_branch
          %149 = sbr.rel (%p147) target = $region28
        $region27: #{tpu_custom_call.1} parent=23 // pred_region
          %p150 = scmp.lt.s32.totalorder %s19, 1
          %s151 = scalar_select %p150, %s19, 1
          %p152 = scmp.lt.s32.totalorder %s20, 0
          %s153 = scalar_select %p152, %s20, 0
          %s154 = sadd.s32 %s153, %s151
          %s155 = smul.addr %s154, 4
          %s156 = scalar_lea.vmem %s0, %s155
        $region28: #{tpu_custom_call.1} parent=23 // pred_fallthru
          _
      $region24: #{tpu_custom_call.1} parent=5 // pred_fallthru
        _
      %p157 = scmp.le.s32.totalorder 1, %s12
      %p158 = scmp.lt.s32.totalorder %s12, 3
      %p159 = pnand %p157, %p158
      %p160 = pneg %p159
      // Predicated region
      $region29: #{tpu_custom_call.1} parent=5 // pred_check
        _
      $region30: #{tpu_custom_call.1} parent=5 // pred_check_branch
        %162 = sbr.rel (%p159) target = $region32
      $region31: #{tpu_custom_call.1} parent=5 // pred_region
        %s163 = ssub.s32 %s12, 1
        %p164 = scmp.lt.s32.totalorder %s21, 1
        %s165 = scalar_select %p164, %s21, 1
        %p166 = scmp.lt.s32.totalorder %s22, 0
        %s167 = scalar_select %p166, %s22, 0
        %s168 = sadd.s32 %s167, %s165
        %s169 = smul.addr %s168, 4
        %s170 = scalar_lea.vmem %s0, %s169
        %p171 = pneg %p52
        %p172 = pneg %p49
        %p173 = pneg %p73
        %p174 = pneg %p70
        %p175 = pneg %p94
        %p176 = pneg %p91
        %p177 = pneg %p122
        %p178 = pneg %p119
        %s179 = sand.u32 %s109, 1
        %s180 = scalar_lea.sflag [#allocation3], %s179
        %s181 = sand.u32 %s109, 1
        %s182 = smul.addr %s181, 8
        %s183 = scalar_lea.vmem [#allocation2], %s182
        %p184 = scmp.lt.s32.totalorder %s21, 1
        %s185 = scalar_select %p184, %s21, 1
        %p186 = scmp.lt.s32.totalorder %s22, 0
        %s187 = scalar_select %p186, %s22, 0
        %s188 = sadd.s32 %s187, %s185
        %s189 = smul.addr %s188, 4
        %s190 = scalar_lea.vmem %s0, %s189
        %v191 = vld [vmem:[%s2] sm:$0xff]
        %v192 = vld [vmem:[%s1] sm:$0xff]
        %194 = vset.pattern.permute.xlu0 0
        %195 = vperm.xlu0 %194, %v191
        %v196 = vpop.permute.xlu0 %195
        %v198 = vld [vmem:[%s190] sm:$0x1]
        %200 = vset.pattern.permute.xlu0 0
        %201 = vperm.xlu0 %200, %v192
        %v202 = vpop.permute.xlu0 %201
        %v204 = vlaneseq
        %v205 = vshrl.u32 %v204, 7
        %v206 = vsub.s32 0, %v205
        %v207 = vrot.slane %v198, %v206
        %v208 = vmul.f32 %v202, %v207
        %v209 = vadd.f32 %v196, %v208
        %v210 = vld [vmem:[%s190 + $0x1] sm:$0x1]
        %211 = vset.pattern.permute.xlu0 1
        %212 = vperm.xlu0 %211, %v192
        %v213 = vpop.permute.xlu0 %212
        %v215 = vlaneseq
        %v216 = vshrl.u32 %v215, 7
        %v217 = vsub.s32 0, %v216
        %v218 = vrot.slane %v210, %v217
        %v219 = vmul.f32 %v213, %v218
        %v220 = vadd.f32 %v209, %v219
        %v221 = vld [vmem:[%s190 + $0x2] sm:$0x1]
        %222 = vset.pattern.permute.xlu0 2
        %223 = vperm.xlu0 %222, %v192
        %v224 = vpop.permute.xlu0 %223
        %v226 = vlaneseq
        %v227 = vshrl.u32 %v226, 7
        %v228 = vsub.s32 0, %v227
        %v229 = vrot.slane %v221, %v228
        %v230 = vmul.f32 %v224, %v229
        %v231 = vadd.f32 %v220, %v230
        %v232 = vld [vmem:[%s190 + $0x3] sm:$0x1]
        %233 = vset.pattern.permute.xlu0 3
        %234 = vperm.xlu0 %233, %v192
        %v235 = vpop.permute.xlu0 %234
        %v237 = vlaneseq
        %v238 = vshrl.u32 %v237, 7
        %v239 = vsub.s32 0, %v238
        %v240 = vrot.slane %v232, %v239
        %v241 = vmul.f32 %v235, %v240
        %v242 = vadd.f32 %v231, %v241
        %243 = vst [vmem:[%s183] sm:$0xff] %v242
        %s244 = sand.u32 %s109, 1
        %s245 = scalar_lea.sflag [#allocation3], %s244
        %s246 = sand.u32 %s109, 1
        %s247 = smul.addr %s246, 8
        %s248 = scalar_lea.vmem [#allocation2], %s247
        // Predicated region
        $region33: #{tpu_custom_call.1} parent=31 // pred_check
          %p249 = pneg %p119
        $region34: #{tpu_custom_call.1} parent=31 // pred_check_branch
          %251 = sbr.rel (%p249) target = $region36
        $region35: #{tpu_custom_call.1} parent=31 // pred_region
          %s253 = ssub.s32 128, 128
          %254 = vsyncadd %s245, %s253
          %s255 = sadd.s32 %s22, %s21
          %s256 = smul.addr %s255, 128
          %s257 = scalar_lea.hbm %s3, %s256
          %s259 = sshll.u32 %s248, 4
          %s260 = int_to_ptr.vmem [resolvable:$true] %s259
          %262 = dma.vmem_to_hbm [thread:$0]  %s260, 128, %s257, %s245
        $region36: #{tpu_custom_call.1} parent=31 // pred_fallthru
          _
      $region32: #{tpu_custom_call.1} parent=5 // pred_fallthru
        _
      %p263 = scmp.le.s32.totalorder 2, %s12
      // Predicated region
      $region37: #{tpu_custom_call.1} parent=5 // pred_check
        %p264 = pneg %p263
      $region38: #{tpu_custom_call.1} parent=5 // pred_check_branch
        %266 = sbr.rel (%p264) target = $region40
      $region39: #{tpu_custom_call.1} parent=5 // pred_region
        %s267 = ssub.s32 %s12, 2
        // Predicated region
        $region41: #{tpu_custom_call.1} parent=39 // pred_check
          %p268 = pneg %p125
        $region42: #{tpu_custom_call.1} parent=39 // pred_check_branch
          %270 = sbr.rel (%p268) target = $region44
        $region43: #{tpu_custom_call.1} parent=39 // pred_region
          %s271 = sand.u32 %s110, 1
          %s272 = scalar_lea.sflag [#allocation3], %s271
          %s273 = sand.u32 %s110, 1
          %s274 = smul.addr %s273, 8
          %s275 = scalar_lea.vmem [#allocation2], %s274
          %276 = dma.done %s272, 128
        $region44: #{tpu_custom_call.1} parent=39 // pred_fallthru
          _
      $region40: #{tpu_custom_call.1} parent=5 // pred_fallthru
        _
    $region6: #{tpu_custom_call.1} parent=1 // loop_footer
      %s16 = sadd.s32 1, %s12
    $region7: #{tpu_custom_call.1} parent=1 // loop_footer_branch
      %11 = sbr.rel target = $region3
    $region8: #{tpu_custom_call.1} parent=1 // loop_exit
      _
    %277 = vsyncpa [#allocation3], 1
    %s278 = scalar_lea.sflag [#allocation3], 1
    %279 = vsyncpa %s278, 1

</llo_original>
